<compile_context>
chip_gen: v5e
topology: v5e:2x2
jax: 0.10.0
libtpu: 0.0.40
codegen_flags: <defaults>
</compile_context>

<pallas_src>
import jax
import jax.numpy as jnp
from jax.experimental import pallas as pl
from jax.experimental.pallas import tpu as pltpu


def attn_kernel(enc_ref, hb_ref, bias_ref, we_ref, v_ref, out_ref):
    """One grid step processes TB full batch rows.

    enc_ref : (TB, S, E2)  encoder outputs
    hb_ref  : (TB, 1, D)   hidden @ Wh + b (precomputed in the wrapper)
    bias_ref: (TB, 1, S)   additive mask bias (0 / -1e10)
    we_ref  : (E2, D)      encoder-side slice of the attn weight (transposed)
    v_ref   : (1, 1, D)    v projection row
    out_ref : (TB, 1, S)   softmax attention weights
    """
    TB, S, E2 = enc_ref.shape
    D = we_ref.shape[-1]

    # enc @ We for all TB batch rows in this step as one batched MXU matmul.
    we_b = jnp.broadcast_to(we_ref[...], (TB, E2, D))
    eproj = jnp.einsum('bse,bed->bsd', enc_ref[...], we_b,
                       preferred_element_type=jnp.float32)            # (TB, S, D)

    # energy = tanh(enc@We + (hidden@Wh + b)); hidden part hoisted to the wrapper.
    energy = jnp.tanh(eproj + hb_ref[...])                             # (TB, S, D)

    # v-projection on the MXU: contract D -> (TB, 1, S); S lands on the lane axis
    # directly, avoiding the XLU lane-reduce + (S,)->(1,S) reshape relayout.
    v_b = jnp.broadcast_to(v_ref[...], (TB, 1, D))
    scores = jnp.einsum('bod,bsd->bos', v_b, energy,
                        preferred_element_type=jnp.float32)            # (TB, 1, S)

    # masked_fill(mask == 0, -1e10) folded into a precomputed additive bias.
    scores = scores + bias_ref[...]

    # Numerically stable softmax over S (lane axis).
    m = jnp.max(scores, axis=-1, keepdims=True)
    e = jnp.exp(scores - m)
    denom = jnp.sum(e, axis=-1, keepdims=True)
    r = pl.reciprocal(denom, approx=True)       # EUP seed (own bundle slot)
    r = r * (2.0 - denom * r)                   # one Newton step -> ~f32-exact
    out_ref[...] = e * r


def attention_forward(hidden, encoder_outputs, mask, attn_w, attn_b, v_w,
                      *, batch_tile=None):
    """hidden: [B, D], encoder_outputs: [B, S, E2], mask: [B, S] (0 == masked).
    attn_w: [D, E2 + D] (torch nn.Linear weight), attn_b: [D], v_w: [1, D]."""
    B, S, E2 = encoder_outputs.shape
    D = hidden.shape[1]

    # Single grid step by default; pass batch_tile to shard large B across TCs (v7x).
    TB = B if batch_tile is None else batch_tile
    assert B % TB == 0, "batch_tile must divide the batch size"
    grid = (B // TB,)

    # Split cat(hidden, enc) @ W^T + b algebraically; hoist the hidden half to XLA:
    #   energy_pre = (hidden @ Wh + b) + enc @ We
    wh = attn_w[:, :D].T                                    # (D, D)   acts on hidden
    we = attn_w[:, D:].T                                    # (E2, D)  acts on enc
    hb = (hidden @ wh + attn_b).reshape(B, 1, D)            # (B, 1, D)
    v3 = v_w.reshape(1, 1, D)                               # (1, 1, D)

    # masked_fill(mask == 0, -1e10) as an additive f32 bias.  Exactly matches the
    # reference whenever each row has >= 1 unmasked position (guaranteed here).
    mask_bias = jnp.where(mask == 0, jnp.float32(-1e10),
                          jnp.float32(0.0)).reshape(B, 1, S)

    flops = 2 * B * S * E2 * D + 2 * B * S * D + 6 * B * S
    transcendentals = B * S * D + B * S + B                  # tanh + exp + reciprocal
    bytes_accessed = 4 * (B * S * E2 + B * D + B * S + E2 * D + D + B * S)

    out3 = pl.pallas_call(
        attn_kernel,
        out_shape=jax.ShapeDtypeStruct((B, 1, S), jnp.float32),
        grid_spec=pltpu.PrefetchScalarGridSpec(
            num_scalar_prefetch=0,
            grid=grid,
            in_specs=[
                pl.BlockSpec((TB, S, E2), lambda b: (b, 0, 0)),   # encoder_outputs
                pl.BlockSpec((TB, 1, D), lambda b: (b, 0, 0)),    # hidden@Wh + b
                pl.BlockSpec((TB, 1, S), lambda b: (b, 0, 0)),    # additive mask bias
                pl.BlockSpec((E2, D), lambda b: (0, 0)),          # We
                pl.BlockSpec((1, 1, D), lambda b: (0, 0, 0)),     # v row
            ],
            out_specs=pl.BlockSpec((TB, 1, S), lambda b: (b, 0, 0)),
        ),
        compiler_params=pltpu.CompilerParams(
            dimension_semantics=("parallel",)),
        cost_estimate=pl.CostEstimate(flops=flops,
                                      transcendentals=transcendentals,
                                      bytes_accessed=bytes_accessed),
    )(encoder_outputs, hb, mask_bias, we, v3)

    return out3[:, 0, :]                                     # (B, S)


def _reference(hidden, encoder_outputs, mask, attn_w, attn_b, v_w):
    """Pure-JAX reference mirroring the PyTorch forward exactly."""
    B, S, _ = encoder_outputs.shape
    h_rep = jnp.repeat(hidden[:, None, :], S, axis=1)                   # [B,S,dec]
    cat = jnp.concatenate([h_rep, encoder_outputs], axis=2)             # [B,S,dec+enc*2]
    energy = jnp.tanh(cat @ attn_w.T + attn_b)                          # [B,S,dec]
    attention = (energy @ v_w.T)[..., 0]                                # [B,S]
    attention = jnp.where(mask == 0, -10000000000.0, attention)
    return jax.nn.softmax(attention, axis=1)


if __name__ == "__main__":
    B = 2          # batch
    S = 8          # src_len
    ENC = 16       # enc_hid_dim  (bidirectional encoder -> features = 2*ENC = 32)
    DEC = 32       # dec_hid_dim
    E2 = 2 * ENC

    key = jax.random.PRNGKey(0)
    k1, k2, k3, k4, k5, k6 = jax.random.split(key, 6)

    # Deterministic parameter init (nn.Linear shapes).
    attn_w = jax.random.uniform(k1, (DEC, E2 + DEC), jnp.float32, -0.1, 0.1)
    attn_b = jax.random.uniform(k2, (DEC,), jnp.float32, -0.1, 0.1)
    v_w = jax.random.uniform(k3, (1, DEC), jnp.float32, -0.1, 0.1)

    # Example inputs.
    hidden = jax.random.normal(k4, (B, DEC), jnp.float32)
    encoder_outputs = jax.random.normal(k5, (B, S, E2), jnp.float32)
    mask = (jax.random.uniform(k6, (B, S)) > 0.25).astype(jnp.int32)
    mask = mask.at[:, 0].set(1)  # ensure at least one unmasked position per row

    out = attention_forward(hidden, encoder_outputs, mask, attn_w, attn_b, v_w)
    out = jax.block_until_ready(out)

    ref = _reference(hidden, encoder_outputs, mask, attn_w, attn_b, v_w)
    assert out.shape == (B, S)
    assert jnp.allclose(out, ref, atol=1e-4, rtol=1e-4), "mismatch vs reference"
    assert jnp.allclose(out.sum(axis=1), 1.0, atol=1e-4), "softmax rows must sum to 1"

    print("KERNEL_OK")
</pallas_src>

<mosaic_0001>
module attributes {stable_mosaic.version = 11 : i64} {
  func.func @attn_kernel(%arg0: i32, %arg1: memref<2x8x32xf32, #tpu.memory_space<vmem>>, %arg2: memref<2x1x32xf32, #tpu.memory_space<vmem>>, %arg3: memref<2x1x8xf32, #tpu.memory_space<vmem>>, %arg4: memref<32x32xf32, #tpu.memory_space<vmem>>, %arg5: memref<1x1x32xf32, #tpu.memory_space<vmem>>, %arg6: memref<2x1x8xf32, #tpu.memory_space<vmem>>) attributes {dimension_semantics = [#tpu.dimension_semantics<parallel>], iteration_bounds = array<i64: 1>, scalar_prefetch = 0 : i64, scratch_operands = 0 : i64, tpu.core_type = #tpu.core_type<tc>, window_params = [{transform_indices = @transform_0, window_bounds = array<i64: 2, 8, 32>}, {transform_indices = @transform_1, window_bounds = array<i64: 2, 1, 32>}, {transform_indices = @transform_2, window_bounds = array<i64: 2, 1, 8>}, {pipeline_mode = #tpu.pipeline_mode<synchronous>, transform_indices = @transform_3, window_bounds = array<i64: 32, 32>}, {pipeline_mode = #tpu.pipeline_mode<synchronous>, transform_indices = @transform_4, window_bounds = array<i64: 1, 1, 32>}, {transform_indices = @transform_5, window_bounds = array<i64: 2, 1, 8>}]} {
    %c0 = arith.constant 0 : index
    %c0_0 = arith.constant 0 : index
    %0 = vector.load %arg4[%c0, %c0_0] : memref<32x32xf32, #tpu.memory_space<vmem>>, vector<32x32xf32>
    %1 = vector.shape_cast %0 : vector<32x32xf32> to vector<1x32x32xf32>
    %2 = vector.broadcast %1 : vector<1x32x32xf32> to vector<2x32x32xf32>
    %c0_1 = arith.constant 0 : index
    %c0_2 = arith.constant 0 : index
    %c0_3 = arith.constant 0 : index
    %3 = vector.load %arg1[%c0_1, %c0_2, %c0_3] : memref<2x8x32xf32, #tpu.memory_space<vmem>>, vector<2x8x32xf32>
    "tpu.trace_start"() <{level = 10 : i32, message = "bse,bed->bsd"}> : () -> ()
    %cst = arith.constant dense<0.000000e+00> : vector<2x8x32xf32>
    %4 = tpu.matmul %3, %2, %cst {dimension_numbers = #tpu.dot_dimension_numbers<[2], [1], [1], [2], [0, 0, 0, 1, 1, 2], [0], [0]>} : vector<2x8x32xf32>, vector<2x32x32xf32>, vector<2x8x32xf32> -> vector<2x8x32xf32>
    "tpu.trace_stop"() : () -> ()
    %c0_4 = arith.constant 0 : index
    %c0_5 = arith.constant 0 : index
    %c0_6 = arith.constant 0 : index
    %5 = vector.load %arg2[%c0_4, %c0_5, %c0_6] : memref<2x1x32xf32, #tpu.memory_space<vmem>>, vector<2x1x32xf32>
    %6 = vector.broadcast %5 : vector<2x1x32xf32> to vector<2x8x32xf32>
    %7 = arith.addf %4, %6 : vector<2x8x32xf32>
    %8 = math.tanh %7 : vector<2x8x32xf32>
    %c0_7 = arith.constant 0 : index
    %c0_8 = arith.constant 0 : index
    %c0_9 = arith.constant 0 : index
    %9 = vector.load %arg5[%c0_7, %c0_8, %c0_9] : memref<1x1x32xf32, #tpu.memory_space<vmem>>, vector<1x1x32xf32>
    %10 = vector.shape_cast %9 : vector<1x1x32xf32> to vector<1x1x32xf32>
    %11 = vector.broadcast %10 : vector<1x1x32xf32> to vector<2x1x32xf32>
    "tpu.trace_start"() <{level = 10 : i32, message = "bod,bsd->bos"}> : () -> ()
    %cst_10 = arith.constant dense<0.000000e+00> : vector<2x1x8xf32>
    %12 = tpu.matmul %11, %8, %cst_10 {dimension_numbers = #tpu.dot_dimension_numbers<[2], [2], [1], [1], [0, 0, 0, 1, 1, 1], [0], [0]>} : vector<2x1x32xf32>, vector<2x8x32xf32>, vector<2x1x8xf32> -> vector<2x1x8xf32>
    "tpu.trace_stop"() : () -> ()
    %c0_11 = arith.constant 0 : index
    %c0_12 = arith.constant 0 : index
    %c0_13 = arith.constant 0 : index
    %13 = vector.load %arg3[%c0_11, %c0_12, %c0_13] : memref<2x1x8xf32, #tpu.memory_space<vmem>>, vector<2x1x8xf32>
    %14 = arith.addf %12, %13 : vector<2x1x8xf32>
    %cst_14 = arith.constant dense<0xFF800000> : vector<2x1xf32>
    %15 = vector.multi_reduction <maximumf>, %14, %cst_14 [2] : vector<2x1x8xf32> to vector<2x1xf32>
    %16 = vector.shape_cast %15 : vector<2x1xf32> to vector<2x1x1xf32>
    %17 = vector.broadcast %16 : vector<2x1x1xf32> to vector<2x1x8xf32>
    %18 = arith.subf %14, %17 : vector<2x1x8xf32>
    %19 = math.exp %18 : vector<2x1x8xf32>
    %cst_15 = arith.constant dense<0.000000e+00> : vector<2x1xf32>
    %20 = vector.multi_reduction <add>, %19, %cst_15 [2] : vector<2x1x8xf32> to vector<2x1xf32>
    %21 = vector.shape_cast %20 : vector<2x1xf32> to vector<2x1x1xf32>
    %22 = tpu.reciprocal %21 {approx = true} : vector<2x1x1xf32> -> vector<2x1x1xf32>
    %23 = arith.mulf %21, %22 : vector<2x1x1xf32>
    %cst_16 = arith.constant 2.000000e+00 : f32
    %24 = vector.broadcast %cst_16 : f32 to vector<2x1x1xf32>
    %25 = arith.subf %24, %23 : vector<2x1x1xf32>
    %26 = arith.mulf %22, %25 : vector<2x1x1xf32>
    %27 = vector.broadcast %26 : vector<2x1x1xf32> to vector<2x1x8xf32>
    %28 = arith.mulf %19, %27 : vector<2x1x8xf32>
    %c0_17 = arith.constant 0 : index
    %c0_18 = arith.constant 0 : index
    %c0_19 = arith.constant 0 : index
    %29 = vector.load %arg6[%c0_17, %c0_18, %c0_19] : memref<2x1x8xf32, #tpu.memory_space<vmem>>, vector<2x1x8xf32>
    tpu.vector_store %arg6[%c0_17, %c0_18, %c0_19], %28 {strides = array<i32>} : memref<2x1x8xf32, #tpu.memory_space<vmem>>, vector<2x1x8xf32>,
    return
  }
  func.func @transform_0(%arg0: i32) -> (i32, i32, i32) {
    %c0_i32 = arith.constant 0 : i32
    %c0_i32_0 = arith.constant 0 : i32
    %c0_i32_1 = arith.constant 0 : i32
    return %arg0, %c0_i32, %c0_i32_0 : i32, i32, i32
  }
  func.func @transform_1(%arg0: i32) -> (i32, i32, i32) {
    %c0_i32 = arith.constant 0 : i32
    %c0_i32_0 = arith.constant 0 : i32
    %c0_i32_1 = arith.constant 0 : i32
    return %arg0, %c0_i32, %c0_i32_0 : i32, i32, i32
  }
  func.func @transform_2(%arg0: i32) -> (i32, i32, i32) {
    %c0_i32 = arith.constant 0 : i32
    %c0_i32_0 = arith.constant 0 : i32
    %c0_i32_1 = arith.constant 0 : i32
    return %arg0, %c0_i32, %c0_i32_0 : i32, i32, i32
  }
  func.func @transform_3(%arg0: i32) -> (i32, i32) {
    %c0_i32 = arith.constant 0 : i32
    %c0_i32_0 = arith.constant 0 : i32
    %c0_i32_1 = arith.constant 0 : i32
    return %c0_i32, %c0_i32_0 : i32, i32
  }
  func.func @transform_4(%arg0: i32) -> (i32, i32, i32) {
    %c0_i32 = arith.constant 0 : i32
    %c0_i32_0 = arith.constant 0 : i32
    %c0_i32_1 = arith.constant 0 : i32
    %c0_i32_2 = arith.constant 0 : i32
    return %c0_i32, %c0_i32_0, %c0_i32_1 : i32, i32, i32
  }
  func.func @transform_5(%arg0: i32) -> (i32, i32, i32) {
    %c0_i32 = arith.constant 0 : i32
    %c0_i32_0 = arith.constant 0 : i32
    %c0_i32_1 = arith.constant 0 : i32
    return %arg0, %c0_i32, %c0_i32_0 : i32, i32, i32
  }
}

</mosaic_0001>

<llo_original>
// kernel: tpu_custom_call.1
$region0: #{tpu_custom_call.1}
  #allocation0 [shape = 'u32[]', space=smem, size = 0x4, offset = 0x4, fixed_abs, tag = 'smem constant byte address 0x4 - core index']
  #allocation1 [shape = 'u32[72,128]{1,0:T(1,128)}', space=vmem, size = 0x9000, scoped, tag = 'internal scratch']
  %s0 = inlined_call_operand.hbm [shape: f32[2,8,32], index: 0, kind: input, shape index: {}]
  %s1 = inlined_call_operand.hbm [shape: f32[2,1,32], index: 1, kind: input, shape index: {}]
  %s2 = inlined_call_operand.hbm [shape: f32[2,1,8], index: 2, kind: input, shape index: {}]
  %s3 = inlined_call_operand.hbm [shape: f32[32,32], index: 3, kind: input, shape index: {}]
  %s4 = inlined_call_operand.vmem [shape: f32[1,1,32], index: 4, kind: input, shape index: {}]
  %s5 = inlined_call_operand.hbm [shape: f32[2,1,8], index: 5, kind: output, shape index: {}]
  %s6 = sld [smem:[#allocation0]]
  $region46: #{tpu_custom_call.1} parent=0
    _
  %s8 = ssub.s32 1, %s6
  %s9 = scalar_select 0, %s8, %s6
  $region1: #{tpu_custom_call.1} parent=0
    #allocation2 [shape = 'u8[8192]{0}', space=vmem, size = 0x2000, scoped, tag = 'input window, operand 0, single buffered']
    #allocation3 [shape = 's32[1]{0}', space=sflag, size = 0x4, scoped, tag = 'scoped memory for tpu_custom_call.1']
    #allocation4 [shape = 's32[1]{0}', space=sflag, size = 0x4, scoped, tag = 'scoped memory for tpu_custom_call.1']
    #allocation5 [shape = 'u8[1024]{0}', space=vmem, size = 0x400, scoped, tag = 'input window, operand 1, single buffered']
    #allocation6 [shape = 's32[1]{0}', space=sflag, size = 0x4, scoped, tag = 'scoped memory for tpu_custom_call.1']
    #allocation7 [shape = 'u8[1024]{0}', space=vmem, size = 0x400, scoped, tag = 'input window, operand 2, single buffered']
    #allocation8 [shape = 'u8[16384]{0}', space=vmem, size = 0x4000, scoped, tag = 'input window, operand 3, single buffered']
    #allocation9 [shape = 's32[1]{0}', space=sflag, size = 0x4, scoped, tag = 'scoped memory for tpu_custom_call.1']
    #allocation10 [shape = 'u8[1024]{0}', space=vmem, size = 0x400, scoped, tag = 'output window, operand 0, single buffered']
    %10 = vsyncpa [#allocation3], 0
    %11 = vsyncpa [#allocation6], 0
    %12 = vsyncpa [#allocation9], 0
    %13 = vsyncpa [#allocation4], 0
    // Predicated region
    $region2: #{tpu_custom_call.1} parent=1 // pred_check
      _
    $region3: #{tpu_custom_call.1} parent=1 // pred_check_branch
      %15 = sbr.rel (0) target = $region5
    $region4: #{tpu_custom_call.1} parent=1 // pred_region
      %17 = vsyncadd [#allocation3], 0
      %s18 = sshll.u32 %s0, 4
      %s19 = int_to_ptr.hbm [resolvable:$true] %s18
      %s20 = sshll.u32 [#allocation2], 4
      %s21 = int_to_ptr.vmem [resolvable:$true] %s20
      %26 = dma.hbm_to_vmem [thread:$0]  %s19, 256, %s21, [#allocation3], 128, 128, 8
    $region5: #{tpu_custom_call.1} parent=1 // pred_fallthru
      _
    // Predicated region
    $region6: #{tpu_custom_call.1} parent=1 // pred_check
      _
    $region7: #{tpu_custom_call.1} parent=1 // pred_check_branch
      %28 = sbr.rel (0) target = $region9
    $region8: #{tpu_custom_call.1} parent=1 // pred_region
      %30 = vsyncadd [#allocation6], 0
      %s31 = sshll.u32 %s1, 4
      %s32 = int_to_ptr.hbm [resolvable:$true] %s31
      %s33 = sshll.u32 [#allocation5], 4
      %s34 = int_to_ptr.vmem [resolvable:$true] %s33
      %39 = dma.hbm_to_vmem [thread:$0]  %s32, 32, %s34, [#allocation6], 16, 16, 1
    $region9: #{tpu_custom_call.1} parent=1 // pred_fallthru
      _
    // Predicated region
    $region10: #{tpu_custom_call.1} parent=1 // pred_check
      _
    $region11: #{tpu_custom_call.1} parent=1 // pred_check_branch
      %41 = sbr.rel (0) target = $region13
    $region12: #{tpu_custom_call.1} parent=1 // pred_region
      %43 = vsyncadd [#allocation6], 0
      %s44 = sshll.u32 %s2, 4
      %s45 = int_to_ptr.hbm [resolvable:$true] %s44
      %s46 = sshll.u32 [#allocation7], 4
      %s47 = int_to_ptr.vmem [resolvable:$true] %s46
      %52 = dma.hbm_to_vmem [thread:$0]  %s45, 32, %s47, [#allocation6], 16, 16, 1
    $region13: #{tpu_custom_call.1} parent=1 // pred_fallthru
      _
    // Predicated region
    $region14: #{tpu_custom_call.1} parent=1 // pred_check
      _
    $region15: #{tpu_custom_call.1} parent=1 // pred_check_branch
      %54 = sbr.rel (0) target = $region17
    $region16: #{tpu_custom_call.1} parent=1 // pred_region
      %56 = vsyncadd [#allocation9], 0
      %s57 = sshll.u32 %s3, 4
      %s58 = int_to_ptr.hbm [resolvable:$true] %s57
      %s59 = sshll.u32 [#allocation8], 4
      %s60 = int_to_ptr.vmem [resolvable:$true] %s59
      %65 = dma.hbm_to_vmem [thread:$0]  %s58, 512, %s60, [#allocation9], 128, 128, 8
    $region17: #{tpu_custom_call.1} parent=1 // pred_fallthru
      _
    // Predicated region
    $region18: #{tpu_custom_call.1} parent=1 // pred_check
      _
    $region19: #{tpu_custom_call.1} parent=1 // pred_check_branch
      %67 = sbr.rel (0) target = $region21
    $region20: #{tpu_custom_call.1} parent=1 // pred_region
      _
    $region21: #{tpu_custom_call.1} parent=1 // pred_fallthru
      _
    // Predicated region
    $region22: #{tpu_custom_call.1} parent=1 // pred_check
      _
    $region23: #{tpu_custom_call.1} parent=1 // pred_check_branch
      %69 = sbr.rel (0) target = $region25
    $region24: #{tpu_custom_call.1} parent=1 // pred_region
      %71 = dma.done [#allocation3], 256
    $region25: #{tpu_custom_call.1} parent=1 // pred_fallthru
      _
    // Predicated region
    $region26: #{tpu_custom_call.1} parent=1 // pred_check
      _
    $region27: #{tpu_custom_call.1} parent=1 // pred_check_branch
      %73 = sbr.rel (0) target = $region29
    $region28: #{tpu_custom_call.1} parent=1 // pred_region
      %75 = dma.done [#allocation6], 32
    $region29: #{tpu_custom_call.1} parent=1 // pred_fallthru
      _
    // Predicated region
    $region30: #{tpu_custom_call.1} parent=1 // pred_check
      _
    $region31: #{tpu_custom_call.1} parent=1 // pred_check_branch
      %77 = sbr.rel (0) target = $region33
    $region32: #{tpu_custom_call.1} parent=1 // pred_region
      %79 = dma.done [#allocation6], 32
    $region33: #{tpu_custom_call.1} parent=1 // pred_fallthru
      _
    // Predicated region
    $region34: #{tpu_custom_call.1} parent=1 // pred_check
      _
    $region35: #{tpu_custom_call.1} parent=1 // pred_check_branch
      %81 = sbr.rel (0) target = $region37
    $region36: #{tpu_custom_call.1} parent=1 // pred_region
      %83 = dma.done [#allocation9], 512
    $region37: #{tpu_custom_call.1} parent=1 // pred_fallthru
      _
    %v84 = vld [vmem:[#allocation8] sm:$0xff]
    %v85 = vld [vmem:[#allocation8 + $0x8] sm:$0xff]
    %v86 = vld [vmem:[#allocation8 + $0x10] sm:$0xff]
    %v87 = vld [vmem:[#allocation8 + $0x18] sm:$0xff]
    %v88 = vld [vmem:[#allocation2] sm:$0xff]
    %v89 = vld [vmem:[#allocation2 + $0x8] sm:$0xff]
    %v90 = vld [vmem:[#allocation5] sm:$0x1]
    %v91 = vld [vmem:[#allocation5 + $0x1] sm:$0x1]
    %v94 = vperm.slane %v90, 0
    %v95 = vperm.slane %v91, 0
    %vm98 = vcmask 261120
    %v100 = vsel %vm98, %v88, 0
    %102 = vmatpush.msra.mxu0 0.0
    %103 = vmatpush.msra.mxu0 0.0
    %104 = vmatpush.msra.mxu0 0.0
    %105 = vmatpush.msra.mxu0 0.0
    %106 = vmatpush.msra.mxu0 0.0
    %107 = vmatpush.msra.mxu0 0.0
    %108 = vmatpush.msra.mxu0 0.0
    %109 = vmatpush.msra.mxu0 0.0
    %110 = vmatpush.msra.mxu0 0.0
    %111 = vmatpush.msra.mxu0 0.0
    %112 = vmatpush.msra.mxu0 0.0
    %113 = vmatpush.msra.mxu0 0.0
    %114 = vmatpush.msra.mxu0 %v87
    %115 = vmatpush.msra.mxu0 %v86
    %116 = vmatpush.msra.mxu0 %v85
    %117 = vmatpush.msra.mxu0 %v84
    %118 = vmatmul.f32.gmra.mxu0 %v100
    %v119 = vpop.f32.mrf.mxu0
    %v120 = vadd.f32 %v94, %v119
    %121 = vdwg.mxu0
    %v123 = vsel %vm98, %v89, 0
    %125 = vmatpush.msra.mxu0 0.0
    %126 = vmatpush.msra.mxu0 0.0
    %127 = vmatpush.msra.mxu0 0.0
    %128 = vmatpush.msra.mxu0 0.0
    %129 = vmatpush.msra.mxu0 0.0
    %130 = vmatpush.msra.mxu0 0.0
    %131 = vmatpush.msra.mxu0 0.0
    %132 = vmatpush.msra.mxu0 0.0
    %133 = vmatpush.msra.mxu0 0.0
    %134 = vmatpush.msra.mxu0 0.0
    %135 = vmatpush.msra.mxu0 0.0
    %136 = vmatpush.msra.mxu0 0.0
    %137 = vmatpush.msra.mxu0 %v87
    %138 = vmatpush.msra.mxu0 %v86
    %139 = vmatpush.msra.mxu0 %v85
    %140 = vmatpush.msra.mxu0 %v84
    %141 = vmatmul.f32.gmra.mxu0 %v123
    %v142 = vpop.f32.mrf.mxu0
    %v143 = vadd.f32 %v95, %v142
    %144 = vdwg.mxu0
    %v145 = vtanh.pop %v120
    %v146 = vtanh.pop %v143
    %v147 = vld [vmem:[%s4] sm:$0x1]
    %v148 = vld [vmem:[#allocation7] sm:$0x1]
    %v149 = vld [vmem:[#allocation7 + $0x1] sm:$0x1]
    %v151 = vsel %vm98, %v147, 0
    %v154 = vsel %vm98, %v145, 0
    %156 = vmatpush.xpose.msra.mxu0 0.0
    %157 = vmatpush.xpose.msra.mxu0 0.0
    %158 = vmatpush.xpose.msra.mxu0 0.0
    %159 = vmatpush.xpose.msra.mxu0 0.0
    %160 = vmatpush.xpose.msra.mxu0 0.0
    %161 = vmatpush.xpose.msra.mxu0 0.0
    %162 = vmatpush.xpose.msra.mxu0 0.0
    %163 = vmatpush.xpose.msra.mxu0 0.0
    %164 = vmatpush.xpose.msra.mxu0 0.0
    %165 = vmatpush.xpose.msra.mxu0 0.0
    %166 = vmatpush.xpose.msra.mxu0 0.0
    %167 = vmatpush.xpose.msra.mxu0 0.0
    %168 = vmatpush.xpose.msra.mxu0 0.0
    %169 = vmatpush.xpose.msra.mxu0 0.0
    %170 = vmatpush.xpose.msra.mxu0 0.0
    %171 = vmatpush.xpose.msra.mxu0 %v154
    %172 = vmatmul.f32.gmra.mxu0 %v151
    %v173 = vpop.f32.mrf.mxu0
    %v174 = vadd.f32 %v148, %v173
    %175 = vdwg.mxu0
    %v177 = vsel %vm98, %v146, 0
    %179 = vmatpush.xpose.msra.mxu0 0.0
    %180 = vmatpush.xpose.msra.mxu0 0.0
    %181 = vmatpush.xpose.msra.mxu0 0.0
    %182 = vmatpush.xpose.msra.mxu0 0.0
    %183 = vmatpush.xpose.msra.mxu0 0.0
    %184 = vmatpush.xpose.msra.mxu0 0.0
    %185 = vmatpush.xpose.msra.mxu0 0.0
    %186 = vmatpush.xpose.msra.mxu0 0.0
    %187 = vmatpush.xpose.msra.mxu0 0.0
    %188 = vmatpush.xpose.msra.mxu0 0.0
    %189 = vmatpush.xpose.msra.mxu0 0.0
    %190 = vmatpush.xpose.msra.mxu0 0.0
    %191 = vmatpush.xpose.msra.mxu0 0.0
    %192 = vmatpush.xpose.msra.mxu0 0.0
    %193 = vmatpush.xpose.msra.mxu0 0.0
    %194 = vmatpush.xpose.msra.mxu0 %v177
    %195 = vmatmul.f32.gmra.mxu0 %v151
    %v196 = vpop.f32.mrf.mxu0
    %v197 = vadd.f32 %v149, %v196
    %198 = vdwg.mxu0
    %vm199 = vcmask 57344
    %v200 = vsel %vm199, %v174, -inf
    %201 = vmax.xlane.f32.xlu0 %v200
    %v202 = vpop.xlane.xlu0 %201
    %v203 = vsel %vm199, %v197, -inf
    %204 = vmax.xlane.f32.xlu0 %v203
    %v205 = vpop.xlane.xlu0 %204
    %v206 = vsub.f32 %v174, %v202
    %v207 = vsub.f32 %v197, %v205
    %v208 = vmul.f32 %v206, 1.442695
    %v209 = vpow.pop %v208
    %v210 = vmul.f32 %v207, 1.442695
    %v211 = vpow.pop %v210
    %v212 = vsel %vm199, %v209, 0.0
    %213 = vadd.xlane.f32.xlu0 %v212
    %v214 = vpop.xlane.xlu0 %213
    %v215 = vsel %vm199, %v211, 0.0
    %216 = vadd.xlane.f32.xlu0 %v215
    %v217 = vpop.xlane.xlu0 %216
    %v218 = vrcp.pop %v214
    %v219 = vrcp.pop %v217
    %v220 = vmul.f32 %v214, %v218
    %v221 = vmul.f32 %v217, %v219
    %v222 = vsub.f32 2.0, %v220
    %v223 = vsub.f32 2.0, %v221
    %v224 = vmul.f32 %v218, %v222
    %v225 = vmul.f32 %v219, %v223
    %v226 = vmul.f32 %v209, %v224
    %v227 = vmul.f32 %v211, %v225
    %228 = vst.msk [vmem:[#allocation10] sm:$0x1] %vm199, %v226
    %229 = vst.msk [vmem:[#allocation10 + $0x1] sm:$0x1] %vm199, %v227
    // Predicated region
    $region38: #{tpu_custom_call.1} parent=1 // pred_check
      _
    $region39: #{tpu_custom_call.1} parent=1 // pred_check_branch
      %231 = sbr.rel (0) target = $region41
    $region40: #{tpu_custom_call.1} parent=1 // pred_region
      %233 = vsyncadd [#allocation4], 0
      %s234 = sshll.u32 [#allocation10], 4
      %s235 = int_to_ptr.vmem [resolvable:$true] %s234
      %s236 = sshll.u32 %s5, 4
      %s237 = int_to_ptr.hbm [resolvable:$true] %s236
      %242 = dma.vmem_to_hbm [thread:$0]  %s235, 32, %s237, [#allocation4], 16, 16, 1
    $region41: #{tpu_custom_call.1} parent=1 // pred_fallthru
      _
    // Predicated region
    $region42: #{tpu_custom_call.1} parent=1 // pred_check
      _
    $region43: #{tpu_custom_call.1} parent=1 // pred_check_branch
      %244 = sbr.rel (0) target = $region45
    $region44: #{tpu_custom_call.1} parent=1 // pred_region
      %246 = dma.done [#allocation4], 32
    $region45: #{tpu_custom_call.1} parent=1 // pred_fallthru
      _
    %247 = vsyncpa [#allocation3], 1
    %248 = vsyncpa [#allocation6], 1
    %249 = vsyncpa [#allocation9], 1
    %250 = vsyncpa [#allocation4], 1

</llo_original>
